<compile_context>
chip_gen: v7x
topology: tpu7x:2x2x1
jax: 0.10.0
libtpu: 0.0.40
codegen_flags: <defaults>
</compile_context>

<pallas_src>
import math
import jax
import jax.numpy as jnp
from jax import lax
from jax.experimental import pallas as pl
from jax.experimental.pallas import tpu as pltpu


def _round_up(x, m):
    return ((x + m - 1) // m) * m


def _pick_time_block(T, cap):
    """Largest divisor of T that is <= cap (timesteps per grid iteration)."""
    for cand in range(min(T, cap), 0, -1):
        if T % cand == 0:
            return cand
    return 1


# ---------------------------------------------------------------------------
# Kernel 1: hoisted input projection (off the serial path).
#   gi[d] = sum_p part[p] @ W_ih[d, p]  +  (b_ih + [b_hh_r, b_hh_z, 0])[d]
# grid = (ndir, T // tproj); fully parallel, standard BlockSpec pipelining.
# Parts are time-major (T, B, Dp); for layers > 0 the two direction outputs of
# the previous layer are passed as separate parts (no concatenate in HBM).
# ---------------------------------------------------------------------------
def _make_proj_kernel(nparts):
    def kernel(*refs):
        part_refs = refs[:nparts]
        w_refs = refs[nparts:2 * nparts]
        b_ref = refs[2 * nparts]
        gi_ref = refs[2 * nparts + 1]

        acc = None
        for p in range(nparts):
            gp = lax.dot_general(part_refs[p][...], w_refs[p][...],
                                 (((2,), (0,)), ((), ())),
                                 preferred_element_type=jnp.float32)
            acc = gp if acc is None else acc + gp
        gi_ref[...] = (acc + b_ref[...]).astype(gi_ref.dtype)

    return kernel


def run_input_projection(parts, wih_parts, bproj, *, tproj):
    """parts: list of (T, B, Dp); wih_parts: list of (ndir, Dp, 3Hp);
    bproj: (ndir, 1, 3Hp).  Returns gi: (ndir, T, B, 3Hp)."""
    nparts = len(parts)
    T, B, _ = parts[0].shape
    ndir, _, G = bproj.shape
    nb = T // tproj

    in_specs = []
    for p in range(nparts):
        dp = parts[p].shape[-1]
        in_specs.append(pl.BlockSpec((tproj, B, dp), lambda d, i: (i, 0, 0)))
    for p in range(nparts):
        dp = wih_parts[p].shape[1]
        in_specs.append(pl.BlockSpec((None, dp, G), lambda d, i: (d, 0, 0)))
    in_specs.append(pl.BlockSpec((None, 1, G), lambda d, i: (d, 0, 0)))

    return pl.pallas_call(
        _make_proj_kernel(nparts),
        out_shape=jax.ShapeDtypeStruct((ndir, T, B, G), jnp.float32),
        grid_spec=pltpu.PrefetchScalarGridSpec(
            num_scalar_prefetch=0,
            grid=(ndir, nb),
            in_specs=in_specs,
            out_specs=pl.BlockSpec((None, tproj, B, G),
                                   lambda d, i: (d, i, 0, 0)),
        ),
        compiler_params=pltpu.CompilerParams(
            dimension_semantics=("parallel", "parallel")),
    )(*parts, *wih_parts, bproj)


# ---------------------------------------------------------------------------
# Kernel 2: the serial recurrence.  grid=(T//tblk,) ("arbitrary"); one fused
# h @ W_hh(Hp, 3Hp) per direction per timestep, both directions interleaved in
# the same (static, unrolled) loop body so two independent MXU chains are in
# flight.  Hidden state lives in per-direction (B, Hp) VMEM scratch that
# persists across grid steps; the backward direction's time reversal is the
# index_map (block) + static in-block reverse walk.
# ---------------------------------------------------------------------------
def _make_recurrent_kernel(tblk, B, Hp, ndir, emit_sequence):
    def kernel(*refs):
        gi_refs = refs[:ndir]
        whh_ref = refs[ndir]
        bhn_ref = refs[ndir + 1]
        n_out = ndir if emit_sequence else 1
        out_refs = refs[ndir + 2:ndir + 2 + n_out]
        h_refs = refs[ndir + 2 + n_out:]

        i = pl.program_id(0)
        nb = pl.num_programs(0)

        @pl.when(i == 0)
        def _init():  # torch default h0 = 0
            for d in range(ndir):
                h_refs[d][...] = jnp.zeros((B, Hp), jnp.float32)

        # Hoisted once per grid step (not per timestep): JAX does not CSE
        # broadcast_in_dim.
        bhn = [jnp.broadcast_to(bhn_ref[d], (B, Hp)) for d in range(ndir)]
        h = [h_refs[d][...] for d in range(ndir)]

        # Static (unrolled) time loop -> constant VMEM addresses.  The two
        # directions are independent within an iteration, so the scheduler can
        # overlap their MXU/EUP latency.
        # TODO(synk): for long T, use a larger tblk with a partially unrolled
        # lax.fori_loop (unroll=8) instead of full static unroll.
        for t in range(tblk):
            for d in range(ndir):
                tt = t if d == 0 else tblk - 1 - t      # bwd walks block reversed
                gi = gi_refs[d][tt]                                      # (B, 3Hp)
                gh = jnp.dot(h[d], whh_ref[d],
                             preferred_element_type=jnp.float32)         # (B, 3Hp)
                r = jax.nn.sigmoid(gi[:, 0:Hp] + gh[:, 0:Hp])
                z = jax.nn.sigmoid(gi[:, Hp:2 * Hp] + gh[:, Hp:2 * Hp])
                n = jnp.tanh(gi[:, 2 * Hp:3 * Hp]
                             + r * (gh[:, 2 * Hp:3 * Hp] + bhn[d]))
                h[d] = (1.0 - z) * n + z * h[d]

                if emit_sequence:
                    out_refs[d][tt] = h[d]
                else:
                    # Last layer: only embedding[:, -1, :] is needed.
                    if d == 0 and t == tblk - 1:
                        h_fwd = h[0]

                        @pl.when(i == nb - 1)            # fwd state at t = T-1
                        def _store_fwd():
                            out_refs[0][0] = h_fwd

                    if d == 1 and t == 0:
                        h_bwd = h[1]

                        @pl.when(i == 0)                 # bwd output at t = T-1
                        def _store_bwd():
                            out_refs[0][1] = h_bwd

        for d in range(ndir):
            h_refs[d][...] = h[d]

    return kernel


def run_gru_recurrence(gi, whh, bhn, *, tblk, emit_sequence):
    """gi: (ndir, T, B, 3Hp); whh: (ndir, Hp, 3Hp); bhn: (ndir, 1, Hp)."""
    ndir, T, B, G = gi.shape
    Hp = G // 3
    nb = T // tblk

    in_specs = [pl.BlockSpec((None, tblk, B, G), lambda i: (0, i, 0, 0))]
    gi_args = [gi]
    if ndir == 2:
        # Same gi array, time-reversed block walk for the backward direction.
        in_specs.append(pl.BlockSpec((None, tblk, B, G),
                                     lambda i: (1, nb - 1 - i, 0, 0)))
        gi_args.append(gi)
    # W_hh / b_hn: constant index map -> fetched once, stays VMEM resident.
    # TODO(synk): for production H on v6e/v7x store these in bf16, mark
    # pipeline_mode=pl.Buffered(1) and set vmem_limit_bytes explicitly.
    in_specs.append(pl.BlockSpec((ndir, Hp, G), lambda i: (0, 0, 0)))
    in_specs.append(pl.BlockSpec((ndir, 1, Hp), lambda i: (0, 0, 0)))

    if emit_sequence:
        out_shape = tuple(jax.ShapeDtypeStruct((T, B, Hp), jnp.float32)
                          for _ in range(ndir))
        out_specs = [pl.BlockSpec((tblk, B, Hp), lambda i: (i, 0, 0))]
        if ndir == 2:
            out_specs.append(pl.BlockSpec((tblk, B, Hp),
                                          lambda i: (nb - 1 - i, 0, 0)))
    else:
        out_shape = jax.ShapeDtypeStruct((ndir, B, Hp), jnp.float32)
        out_specs = pl.BlockSpec((ndir, B, Hp), lambda i: (0, 0, 0))

    return pl.pallas_call(
        _make_recurrent_kernel(tblk, B, Hp, ndir, emit_sequence),
        out_shape=out_shape,
        grid_spec=pltpu.PrefetchScalarGridSpec(
            num_scalar_prefetch=0,
            grid=(nb,),
            in_specs=in_specs,
            out_specs=out_specs,
            scratch_shapes=[pltpu.VMEM((B, Hp), jnp.float32)
                            for _ in range(ndir)],
        ),
        compiler_params=pltpu.CompilerParams(
            dimension_semantics=("arbitrary",)),
    )(*gi_args, whh, bhn)


# ---------------------------------------------------------------------------
# Full module forward (glue in plain JAX; all matmuls / gate math in Pallas).
# ---------------------------------------------------------------------------
def gru_module_forward(x, mask, params, hidden_dim, num_layers, bidirectional):
    """x: (B, T, D) batch_first, mask: (B, T) or None. Returns (B, ndir*H)."""
    ndir = 2 if bidirectional else 1
    H = hidden_dim
    if mask is not None:
        x = x * mask[..., None]
    x = x.astype(jnp.float32)

    # One-time layout conversion of the small raw input; every inter-layer
    # activation stays time-major (no transposes / concats between layers).
    parts = [jnp.transpose(x, (1, 0, 2))]                    # [(T, B, D)]
    T = parts[0].shape[0]
    tproj = _pick_time_block(T, cap=256)   # projection: parallel, big blocks
    tblk = _pick_time_block(T, cap=32)     # recurrence: bounded static unroll

    for layer in range(num_layers):
        p = params[layer]
        gi = run_input_projection(parts, p["wih_parts"], p["bproj"],
                                  tproj=tproj)               # (ndir, T, B, 3Hp)
        last = layer == num_layers - 1
        out = run_gru_recurrence(gi, p["whh"], p["bhn"], tblk=tblk,
                                 emit_sequence=not last)
        if last:
            # out: (ndir, B, Hp).  torch's embedding[:, -1, :] ==
            # concat(fwd h at t=T-1, bwd output at t=T-1); slice off padding.
            return jnp.concatenate([out[d, :, :H] for d in range(ndir)],
                                   axis=-1)
        parts = list(out)                                    # ndir x (T, B, Hp)


# ---------------------------------------------------------------------------
# Deterministic parameter init (torch nn.GRU shapes & U(-k, k) scheme) in raw
# torch layout; packed separately (padded / fused / per-part) for the kernels.
# ---------------------------------------------------------------------------
def init_gru_params(key, input_dim, hidden_dim, num_layers, bidirectional):
    ndir = 2 if bidirectional else 1
    k = 1.0 / math.sqrt(hidden_dim)
    raw = {}
    for layer in range(num_layers):
        in_size = input_dim if layer == 0 else hidden_dim * ndir
        for d in range(ndir):
            key, k1, k2, k3, k4 = jax.random.split(key, 5)
            w_ih = jax.random.uniform(k1, (3 * hidden_dim, in_size), jnp.float32, -k, k)
            w_hh = jax.random.uniform(k2, (3 * hidden_dim, hidden_dim), jnp.float32, -k, k)
            b_ih = jax.random.uniform(k3, (3 * hidden_dim,), jnp.float32, -k, k)
            b_hh = jax.random.uniform(k4, (3 * hidden_dim,), jnp.float32, -k, k)
            raw[(layer, d)] = (w_ih, w_hh, b_ih, b_hh)
    return raw


def pack_params_for_kernel(raw, input_dim, hidden_dim, num_layers, bidirectional):
    """torch layout -> lane-padded, gate-fused, per-part kernel layout.

    Gate columns are three contiguous Hp = round_up(H, 128) slabs (r | z | n);
    all padding is zero so padded lanes of h stay exactly zero.
    """
    ndir = 2 if bidirectional else 1
    H = hidden_dim
    Hp = _round_up(H, 128)
    G = 3 * Hp
    packed = []
    for layer in range(num_layers):
        nparts = 1 if layer == 0 else ndir
        dp_raw = input_dim if layer == 0 else H     # raw rows per input part
        dp_pad = input_dim if layer == 0 else Hp    # padded rows per part
        wih_p = [[] for _ in range(nparts)]
        whh_l, bproj_l, bhn_l = [], [], []
        for d in range(ndir):
            w_ih, w_hh, b_ih, b_hh = raw[(layer, d)]
            w_ih_t = w_ih.T                          # (in_size, 3H), cols r|z|n
            w_hh_t = w_hh.T                          # (H, 3H)
            for p in range(nparts):
                rows = w_ih_t[p * dp_raw:(p + 1) * dp_raw]       # (dp_raw, 3H)
                wp = jnp.zeros((dp_pad, G), jnp.float32)
                for g in range(3):
                    wp = wp.at[:dp_raw, g * Hp:g * Hp + H].set(
                        rows[:, g * H:(g + 1) * H])
                wih_p[p].append(wp)
            whh = jnp.zeros((Hp, G), jnp.float32)
            for g in range(3):
                whh = whh.at[:H, g * Hp:g * Hp + H].set(
                    w_hh_t[:, g * H:(g + 1) * H])
            whh_l.append(whh)
            bp = jnp.zeros((G,), jnp.float32)
            bp = bp.at[0:H].set(b_ih[0:H] + b_hh[0:H])                 # r
            bp = bp.at[Hp:Hp + H].set(b_ih[H:2 * H] + b_hh[H:2 * H])   # z
            bp = bp.at[2 * Hp:2 * Hp + H].set(b_ih[2 * H:3 * H])       # n (b_ih only)
            bproj_l.append(bp.reshape(1, G))
            bhn_l.append(jnp.zeros((Hp,), jnp.float32)
                         .at[:H].set(b_hh[2 * H:3 * H]).reshape(1, Hp))
        packed.append(dict(
            wih_parts=[jnp.stack(w) for w in wih_p],   # nparts x (ndir, dp_pad, G)
            whh=jnp.stack(whh_l),                      # (ndir, Hp, G)
            bproj=jnp.stack(bproj_l),                  # (ndir, 1, G)
            bhn=jnp.stack(bhn_l),                      # (ndir, 1, Hp)
        ))
    return packed


# ---------------------------------------------------------------------------
# Pure-JAX reference (torch GRU math) for correctness checking.
# ---------------------------------------------------------------------------
def gru_reference(x, mask, raw, hidden_dim, num_layers, bidirectional):
    if mask is not None:
        x = x * mask[..., None]
    B, T, _ = x.shape
    H = hidden_dim
    ndir = 2 if bidirectional else 1
    inp = x.astype(jnp.float32)
    for layer in range(num_layers):
        outs = []
        for d in range(ndir):
            w_ih, w_hh, b_ih, b_hh = raw[(layer, d)]
            h = jnp.zeros((B, H), jnp.float32)
            seq = [None] * T
            order = range(T) if d == 0 else range(T - 1, -1, -1)
            for t in order:
                xt = inp[:, t, :]
                gi = xt @ w_ih.T + b_ih
                gh = h @ w_hh.T + b_hh
                r = jax.nn.sigmoid(gi[:, :H] + gh[:, :H])
                z = jax.nn.sigmoid(gi[:, H:2 * H] + gh[:, H:2 * H])
                n = jnp.tanh(gi[:, 2 * H:] + r * gh[:, 2 * H:])
                h = (1.0 - z) * n + z * h
                seq[t] = h
            outs.append(jnp.stack(seq, axis=1))
        inp = jnp.concatenate(outs, axis=-1)
    return inp[:, -1, :]


if __name__ == "__main__":
    B, T, D = 2, 8, 16
    hidden_dim, num_layers, bidirectional = 32, 2, True

    key = jax.random.PRNGKey(0)
    key, kx, km, kp = jax.random.split(key, 4)
    x = jax.random.normal(kx, (B, T, D), jnp.float32)
    mask = (jax.random.uniform(km, (B, T)) > 0.2).astype(jnp.float32)

    raw = init_gru_params(kp, D, hidden_dim, num_layers, bidirectional)
    params = pack_params_for_kernel(raw, D, hidden_dim, num_layers, bidirectional)

    out = gru_module_forward(x, mask, params, hidden_dim, num_layers, bidirectional)
    out = jax.block_until_ready(out)

    ref = gru_reference(x, mask, raw, hidden_dim, num_layers, bidirectional)
    ndir = 2 if bidirectional else 1
    assert out.shape == (B, ndir * hidden_dim), out.shape
    err = float(jnp.max(jnp.abs(out - ref)))
    assert jnp.allclose(out, ref, atol=1e-4, rtol=1e-4), err
    print("KERNEL_OK")
</pallas_src>

<mosaic_0001>
module attributes {stable_mosaic.version = 11 : i64} {
  func.func @kernel(%arg0: i32, %arg1: i32, %arg2: memref<8x2x16xf32, #tpu.memory_space<vmem>>, %arg3: memref<1x16x384xf32, #tpu.memory_space<vmem>>, %arg4: memref<1x1x384xf32, #tpu.memory_space<vmem>>, %arg5: memref<1x8x2x384xf32, #tpu.memory_space<vmem>>) attributes {dimension_semantics = [#tpu.dimension_semantics<parallel>, #tpu.dimension_semantics<parallel>], iteration_bounds = array<i64: 2, 1>, scalar_prefetch = 0 : i64, scratch_operands = 0 : i64, tpu.core_type = #tpu.core_type<tc>, window_params = [{transform_indices = @transform_0, window_bounds = array<i64: 8, 2, 16>}, {transform_indices = @transform_1, window_bounds = array<i64: 1, 16, 384>}, {transform_indices = @transform_2, window_bounds = array<i64: 1, 1, 384>}, {transform_indices = @transform_3, window_bounds = array<i64: 1, 8, 2, 384>}]} {
    %c0 = arith.constant 0 : index
    %c0_0 = arith.constant 0 : index
    %c0_1 = arith.constant 0 : index
    %0 = vector.load %arg2[%c0, %c0_0, %c0_1] : memref<8x2x16xf32, #tpu.memory_space<vmem>>, vector<8x2x16xf32>
    %c0_2 = arith.constant 0 : index
    %c0_3 = arith.constant 0 : index
    %c0_4 = arith.constant 0 : index
    %1 = vector.load %arg3[%c0_2, %c0_3, %c0_4] : memref<1x16x384xf32, #tpu.memory_space<vmem>>, vector<1x16x384xf32>
    %2 = vector.shape_cast %1 : vector<1x16x384xf32> to vector<16x384xf32>
    %cst = arith.constant dense<0.000000e+00> : vector<8x2x384xf32>
    %3 = tpu.matmul %0, %2, %cst {dimension_numbers = #tpu.dot_dimension_numbers<[2], [0], [0, 1], [1], [0, 0, 0, 1, 1, 1], [], []>} : vector<8x2x16xf32>, vector<16x384xf32>, vector<8x2x384xf32> -> vector<8x2x384xf32>
    %c0_5 = arith.constant 0 : index
    %c0_6 = arith.constant 0 : index
    %c0_7 = arith.constant 0 : index
    %4 = vector.load %arg4[%c0_5, %c0_6, %c0_7] : memref<1x1x384xf32, #tpu.memory_space<vmem>>, vector<1x1x384xf32>
    %5 = vector.shape_cast %4 : vector<1x1x384xf32> to vector<1x384xf32>
    %6 = vector.shape_cast %5 : vector<1x384xf32> to vector<1x1x384xf32>
    %7 = vector.broadcast %6 : vector<1x1x384xf32> to vector<8x2x384xf32>
    %8 = arith.addf %3, %7 : vector<8x2x384xf32>
    %c0_8 = arith.constant 0 : index
    %c0_9 = arith.constant 0 : index
    %c0_10 = arith.constant 0 : index
    %c0_11 = arith.constant 0 : index
    %9 = vector.load %arg5[%c0_8, %c0_9, %c0_10, %c0_11] : memref<1x8x2x384xf32, #tpu.memory_space<vmem>>, vector<1x8x2x384xf32>
    %10 = vector.shape_cast %9 : vector<1x8x2x384xf32> to vector<8x2x384xf32>
    %11 = vector.shape_cast %8 : vector<8x2x384xf32> to vector<1x8x2x384xf32>
    tpu.vector_store %arg5[%c0_8, %c0_9, %c0_10, %c0_11], %11 {strides = array<i32>} : memref<1x8x2x384xf32, #tpu.memory_space<vmem>>, vector<1x8x2x384xf32>,
    return
  }
  func.func @transform_0(%arg0: i32, %arg1: i32) -> (i32, i32, i32) {
    %c0_i32 = arith.constant 0 : i32
    %c0_i32_0 = arith.constant 0 : i32
    %c0_i32_1 = arith.constant 0 : i32
    return %arg1, %c0_i32, %c0_i32_0 : i32, i32, i32
  }
  func.func @transform_1(%arg0: i32, %arg1: i32) -> (i32, i32, i32) {
    %c0_i32 = arith.constant 0 : i32
    %c0_i32_0 = arith.constant 0 : i32
    %c0_i32_1 = arith.constant 0 : i32
    return %arg0, %c0_i32, %c0_i32_0 : i32, i32, i32
  }
  func.func @transform_2(%arg0: i32, %arg1: i32) -> (i32, i32, i32) {
    %c0_i32 = arith.constant 0 : i32
    %c0_i32_0 = arith.constant 0 : i32
    %c0_i32_1 = arith.constant 0 : i32
    return %arg0, %c0_i32, %c0_i32_0 : i32, i32, i32
  }
  func.func @transform_3(%arg0: i32, %arg1: i32) -> (i32, i32, i32, i32) {
    %c0_i32 = arith.constant 0 : i32
    %c0_i32_0 = arith.constant 0 : i32
    %c0_i32_1 = arith.constant 0 : i32
    return %arg0, %arg1, %c0_i32, %c0_i32_0 : i32, i32, i32, i32
  }
}

</mosaic_0001>

<llo_original>
// kernel: tpu_custom_call.1
$region0: #{tpu_custom_call.1}
  #allocation0 [shape = 'u32[]', space=smem, size = 0x4, offset = 0x4, fixed_abs, tag = 'smem constant byte address 0x4 - core index']
  #allocation1 [shape = 'u32[144,128]{1,0:T(1,128)}', space=vmem, size = 0x12000, scoped, tag = 'internal scratch']
  %s0 = inlined_call_operand.hbm [shape: f32[8,2,16], index: 0, kind: input, shape index: {}]
  %s1 = inlined_call_operand.hbm [shape: f32[2,16,384], index: 1, kind: input, shape index: {}]
  %s2 = inlined_call_operand.vmem [shape: f32[2,1,384], index: 2, kind: input, shape index: {}]
  %s3 = inlined_call_operand.hbm [shape: f32[2,8,2,384], index: 3, kind: output, shape index: {}]
  %s4 = sld [smem:[#allocation0]]
  $region53: #{tpu_custom_call.1} parent=0
    _
  %s6 = ssub.s32 1, %s4
  %s7 = scalar_select 0, %s6, %s4
  $region1: #{tpu_custom_call.1} parent=0
    #allocation2 [shape = 'u8[8192]{0}', space=vmem, size = 0x2000, scoped, tag = 'input window, operand 0, single buffered']
    #allocation3 [shape = 's32[2]{0}', space=sflag, size = 0x8, scoped, tag = 'scoped memory for tpu_custom_call.1']
    #allocation4 [shape = 's32[2]{0}', space=sflag, size = 0x8, scoped, tag = 'scoped memory for tpu_custom_call.1']
    #allocation5 [shape = 'u8[49152]{0}', space=vmem, size = 0xc000, scoped, tag = 'input window, operand 1']
    #allocation6 [shape = 's32[2]{0}', space=sflag, size = 0x8, scoped, tag = 'scoped memory for tpu_custom_call.1']
    #allocation7 [shape = 'u8[49152]{0}', space=vmem, size = 0xc000, scoped, tag = 'output window, operand 0']
    %8 = vsyncpa [#allocation3], 0
    %9 = vsyncpa [#allocation6], 0
    %s10 = scalar_lea.sflag [#allocation6], 1
    %11 = vsyncpa %s10, 0
    %12 = vsyncpa [#allocation4], 0
    %s13 = scalar_lea.sflag [#allocation4], 1
    %14 = vsyncpa %s13, 0
    loop: start=0, step=1, limit=4
    $region2: #{tpu_custom_call.1} parent=1 // loop_pre_header
      _
    $region3: #{tpu_custom_call.1} parent=1 // loop_header
      %s16 = sphi 0, %s20
      %p17 = scmp.ge.s32.totalorder %s16, 4
      %s23 = sphi 0, %s35
      %s24 = sphi 0, %s31
      %s25 = sphi 0, %s23
      %s26 = sphi 0, %s24
      %s27 = sphi 0, %s25
      %s28 = sphi 0, %s26
      %s38 = sphi 0, %s40
      %s41 = sphi 0, %s38
      %s42 = sphi 0, %s41
      %s58 = sphi 0, %s42
      %s64 = sphi 0, %s66
      %s67 = sphi 0, %s64
      %s68 = sphi 0, %s67
      %s84 = sphi 0, %s68
      %s90 = sphi 0, %s92
      %s93 = sphi 0, %s90
      %s94 = sphi 0, %s93
      %s110 = sphi 0, %s94
      %s118 = sphi 0, %s120
      %s121 = sphi 0, %s118
      %s122 = sphi 0, %s121
      %s138 = sphi 0, %s122
    $region4: #{tpu_custom_call.1} parent=1 // loop_header_branch
      %19 = sbr.rel (%p17) target = $region8
    $region5: #{tpu_custom_call.1} parent=1 // loop_body
      %s21 = ssub.s32 %s16, 1
      %s22 = ssub.s32 %s16, 2
      %s29 = sadd.s32 1, %s24
      %p30 = scmp.ge.s32.totalorder %s29, 1
      %s31 = scalar_select %p30, 0, %s29
      %s32 = sadd.s32 1, %s23
      %s33 = scalar_select %p30, %s32, %s23
      %p34 = scmp.ge.s32.totalorder %s33, 2
      %s35 = scalar_select %p34, 0, %s33
      %s36 = ssub.s32 %s24, %s31
      %p37 = scmp.eq.s32.totalorder %s36, 0
      %s39 = sadd.s32 %s38, 1
      %s40 = scalar_select %p37, %s38, %s39
      %p43 = pneg %p37
      %p44 = scmp.eq.s32.totalorder %s16, 1
      %p45 = por %p43, %p44
      %p46 = scmp.ne.s32.totalorder %s38, %s41
      %p47 = scmp.eq.s32.totalorder %s16, 0
      %p48 = por %p46, %p47
      %p49 = scmp.ne.s32.totalorder %s38, %s41
      %p50 = scmp.eq.s32.totalorder %s21, 1
      %p51 = por %p49, %p50
      %p52 = scmp.ne.s32.totalorder %s41, %s42
      %p53 = scmp.eq.s32.totalorder %s21, 0
      %p54 = por %p52, %p53
      %p55 = scmp.ne.s32.totalorder %s41, %s42
      %p56 = scmp.eq.s32.totalorder %s22, 1
      %p57 = por %p55, %p56
      %p59 = scmp.ne.s32.totalorder %s42, %s58
      %p60 = scmp.eq.s32.totalorder %s22, 0
      %p61 = por %p59, %p60
      %s62 = ssub.s32 %s23, %s35
      %p63 = scmp.eq.s32.totalorder %s62, 0
      %s65 = sadd.s32 %s64, 1
      %s66 = scalar_select %p63, %s64, %s65
      %p69 = pneg %p63
      %p70 = scmp.eq.s32.totalorder %s16, 1
      %p71 = por %p69, %p70
      %p72 = scmp.ne.s32.totalorder %s64, %s67
      %p73 = scmp.eq.s32.totalorder %s16, 0
      %p74 = por %p72, %p73
      %p75 = scmp.ne.s32.totalorder %s64, %s67
      %p76 = scmp.eq.s32.totalorder %s21, 1
      %p77 = por %p75, %p76
      %p78 = scmp.ne.s32.totalorder %s67, %s68
      %p79 = scmp.eq.s32.totalorder %s21, 0
      %p80 = por %p78, %p79
      %p81 = scmp.ne.s32.totalorder %s67, %s68
      %p82 = scmp.eq.s32.totalorder %s22, 1
      %p83 = por %p81, %p82
      %p85 = scmp.ne.s32.totalorder %s68, %s84
      %p86 = scmp.eq.s32.totalorder %s22, 0
      %p87 = por %p85, %p86
      %s88 = ssub.s32 %s23, %s35
      %p89 = scmp.eq.s32.totalorder %s88, 0
      %s91 = sadd.s32 %s90, 1
      %s92 = scalar_select %p89, %s90, %s91
      %p95 = pneg %p89
      %p96 = scmp.eq.s32.totalorder %s16, 1
      %p97 = por %p95, %p96
      %p98 = scmp.ne.s32.totalorder %s90, %s93
      %p99 = scmp.eq.s32.totalorder %s16, 0
      %p100 = por %p98, %p99
      %p101 = scmp.ne.s32.totalorder %s90, %s93
      %p102 = scmp.eq.s32.totalorder %s21, 1
      %p103 = por %p101, %p102
      %p104 = scmp.ne.s32.totalorder %s93, %s94
      %p105 = scmp.eq.s32.totalorder %s21, 0
      %p106 = por %p104, %p105
      %p107 = scmp.ne.s32.totalorder %s93, %s94
      %p108 = scmp.eq.s32.totalorder %s22, 1
      %p109 = por %p107, %p108
      %p111 = scmp.ne.s32.totalorder %s94, %s110
      %p112 = scmp.eq.s32.totalorder %s22, 0
      %p113 = por %p111, %p112
      %s114 = ssub.s32 %s23, %s35
      %s115 = ssub.s32 %s24, %s31
      %s116 = sor.u32 %s114, %s115
      %p117 = scmp.eq.s32.totalorder %s116, 0
      %s119 = sadd.s32 %s118, 1
      %s120 = scalar_select %p117, %s118, %s119
      %p123 = pneg %p117
      %p124 = scmp.eq.s32.totalorder %s16, 1
      %p125 = por %p123, %p124
      %p126 = scmp.ne.s32.totalorder %s118, %s121
      %p127 = scmp.eq.s32.totalorder %s16, 0
      %p128 = por %p126, %p127
      %p129 = scmp.ne.s32.totalorder %s118, %s121
      %p130 = scmp.eq.s32.totalorder %s21, 1
      %p131 = por %p129, %p130
      %p132 = scmp.ne.s32.totalorder %s121, %s122
      %p133 = scmp.eq.s32.totalorder %s21, 0
      %p134 = por %p132, %p133
      %p135 = scmp.ne.s32.totalorder %s121, %s122
      %p136 = scmp.eq.s32.totalorder %s22, 1
      %p137 = por %p135, %p136
      %p139 = scmp.ne.s32.totalorder %s122, %s138
      %p140 = scmp.eq.s32.totalorder %s22, 0
      %p141 = por %p139, %p140
      %p142 = scmp.le.s32.totalorder 1, %s16
      %p143 = scmp.lt.s32.totalorder %s16, 3
      %p144 = pnand %p142, %p143
      %p145 = pneg %p144
      // Predicated region
      $region9: #{tpu_custom_call.1} parent=5 // pred_check
        _
      $region10: #{tpu_custom_call.1} parent=5 // pred_check_branch
        %147 = sbr.rel (%p144) target = $region12
      $region11: #{tpu_custom_call.1} parent=5 // pred_region
        %s148 = ssub.s32 %s16, 1
        // Predicated region
        $region13: #{tpu_custom_call.1} parent=11 // pred_check
          %p149 = pneg %p54
        $region14: #{tpu_custom_call.1} parent=11 // pred_check_branch
          %151 = sbr.rel (%p149) target = $region16
        $region15: #{tpu_custom_call.1} parent=11 // pred_region
          %s152 = smul.u32 8, %s26
          %s154 = ssub.s32 256, 256
          %155 = vsyncadd [#allocation3], %s154
          %s156 = smul.addr %s152, 32
          %s157 = scalar_lea.hbm %s0, %s156
          %s158 = sshll.u32 [#allocation2], 4
          %s159 = int_to_ptr.vmem [resolvable:$true] %s158
          %164 = dma.hbm_to_vmem [thread:$0]  %s157, 256, %s159, [#allocation3], 32, 32, 2
        $region16: #{tpu_custom_call.1} parent=11 // pred_fallthru
          _
      $region12: #{tpu_custom_call.1} parent=5 // pred_fallthru
        _
      %p165 = scmp.lt.s32.totalorder %s16, 2
      // Predicated region
      $region17: #{tpu_custom_call.1} parent=5 // pred_check
        %p166 = pneg %p165
      $region18: #{tpu_custom_call.1} parent=5 // pred_check_branch
        %168 = sbr.rel (%p166) target = $region20
      $region19: #{tpu_custom_call.1} parent=5 // pred_region
        // Predicated region
        $region21: #{tpu_custom_call.1} parent=19 // pred_check
          %p169 = pneg %p74
        $region22: #{tpu_custom_call.1} parent=19 // pred_check_branch
          %171 = sbr.rel (%p169) target = $region24
        $region23: #{tpu_custom_call.1} parent=19 // pred_region
          %s172 = sand.u32 %s64, 1
          %s173 = scalar_lea.sflag [#allocation6], %s172
          %s174 = sand.u32 %s64, 1
          %s175 = smul.addr %s174, 48
          %s176 = scalar_lea.vmem [#allocation5], %s175
          %s178 = ssub.s32 768, 768
          %179 = vsyncadd %s173, %s178
          %s180 = smul.addr %s23, 6
          %s181 = smul.addr %s180, 128
          %s182 = scalar_lea.hbm %s1, %s181
          %s183 = sshll.u32 %s176, 4
          %s184 = int_to_ptr.vmem [resolvable:$true] %s183
          %189 = dma.hbm_to_vmem [thread:$0]  %s182, 768, %s184, %s173, 384, 384, 24
        $region24: #{tpu_custom_call.1} parent=19 // pred_fallthru
          _
        // Predicated region
        $region25: #{tpu_custom_call.1} parent=19 // pred_check
          %p190 = pneg %p100
        $region26: #{tpu_custom_call.1} parent=19 // pred_check_branch
          %192 = sbr.rel (%p190) target = $region28
        $region27: #{tpu_custom_call.1} parent=19 // pred_region
          %p193 = scmp.lt.s32.totalorder %s23, 1
          %s194 = scalar_select %p193, %s23, 1
          %s195 = smul.addr %s194, 3
          %s196 = scalar_lea.vmem %s2, %s195
        $region28: #{tpu_custom_call.1} parent=19 // pred_fallthru
          _
      $region20: #{tpu_custom_call.1} parent=5 // pred_fallthru
        _
      %p197 = scmp.le.s32.totalorder 1, %s16
      %p198 = scmp.lt.s32.totalorder %s16, 3
      %p199 = pnand %p197, %p198
      %p200 = pneg %p199
      // Predicated region
      $region29: #{tpu_custom_call.1} parent=5 // pred_check
        _
      $region30: #{tpu_custom_call.1} parent=5 // pred_check_branch
        %202 = sbr.rel (%p199) target = $region32
      $region31: #{tpu_custom_call.1} parent=5 // pred_region
        %s203 = ssub.s32 %s16, 1
        // Predicated region
        $region33: #{tpu_custom_call.1} parent=31 // pred_check
          %p204 = pneg %p54
        $region34: #{tpu_custom_call.1} parent=31 // pred_check_branch
          %206 = sbr.rel (%p204) target = $region36
        $region35: #{tpu_custom_call.1} parent=31 // pred_region
          %207 = dma.done [#allocation3], 256
        $region36: #{tpu_custom_call.1} parent=31 // pred_fallthru
          _
        %s208 = sand.u32 %s67, 1
        %s209 = scalar_lea.sflag [#allocation6], %s208
        %s210 = sand.u32 %s67, 1
        %s211 = smul.addr %s210, 48
        %s212 = scalar_lea.vmem [#allocation5], %s211
        // Predicated region
        $region37: #{tpu_custom_call.1} parent=31 // pred_check
          %p213 = pneg %p80
        $region38: #{tpu_custom_call.1} parent=31 // pred_check_branch
          %215 = sbr.rel (%p213) target = $region40
        $region39: #{tpu_custom_call.1} parent=31 // pred_region
          %216 = dma.done %s209, 768
        $region40: #{tpu_custom_call.1} parent=31 // pred_fallthru
          _
        %p217 = pneg %p54
        %p218 = pneg %p51
        %s219 = sand.u32 %s67, 1
        %s220 = scalar_lea.sflag [#allocation6], %s219
        %s221 = sand.u32 %s67, 1
        %s222 = smul.addr %s221, 48
        %s223 = scalar_lea.vmem [#allocation5], %s222
        %p224 = pneg %p80
        %p225 = pneg %p77
        %p226 = scmp.lt.s32.totalorder %s25, 1
        %s227 = scalar_select %p226, %s25, 1
        %s228 = smul.addr %s227, 3
        %s229 = scalar_lea.vmem %s2, %s228
        %p230 = pneg %p106
        %p231 = pneg %p103
        %p232 = pneg %p134
        %p233 = pneg %p131
        %s234 = sand.u32 %s121, 1
        %s235 = scalar_lea.sflag [#allocation4], %s234
        %s236 = sand.u32 %s121, 1
        %s237 = smul.addr %s236, 48
        %s238 = scalar_lea.vmem [#allocation7], %s237
        %s239 = smul.u32 8, %s26
        %p240 = scmp.lt.s32.totalorder %s25, 1
        %s241 = scalar_select %p240, %s25, 1
        %s242 = smul.addr %s241, 3
        %s243 = scalar_lea.vmem %s2, %s242
        %s244 = smul.u32 8, %s26
        %v245 = vld [vmem:[#allocation2] sm:$0x3]
        %v246 = vld [vmem:[#allocation2 + $0x2] sm:$0x3]
        %v247 = vld [vmem:[#allocation2 + $0x4] sm:$0x3]
        %v248 = vld [vmem:[#allocation2 + $0x6] sm:$0x3]
        %v249 = vld [vmem:[#allocation2 + $0x8] sm:$0x3]
        %v250 = vld [vmem:[#allocation2 + $0xa] sm:$0x3]
        %v251 = vld [vmem:[#allocation2 + $0xc] sm:$0x3]
        %v252 = vld [vmem:[#allocation2 + $0xe] sm:$0x3]
        %v253 = vld [vmem:[%s212] sm:$0xff]
        %v254 = vld [vmem:[%s212 + $0x8] sm:$0xff]
        %v255 = vld [vmem:[%s212 + $0x10] sm:$0xff]
        %v256 = vld [vmem:[%s212 + $0x18] sm:$0xff]
        %v257 = vld [vmem:[%s212 + $0x20] sm:$0xff]
        %v258 = vld [vmem:[%s212 + $0x28] sm:$0xff]
        %v259 = vld [vmem:[%s243] sm:$0x7]
        %v261 = vlaneseq
        %v262 = vshrl.u32 %v261, 7
        %v263 = vsub.s32 0, %v262
        %v264 = vrot.slane %v259, %v263
        %v265 = vlaneseq
        %v266 = vshrl.u32 %v265, 7
        %v267 = vsub.s32 1, %v266
        %v268 = vrot.slane %v259, %v267
        %v269 = vlaneseq
        %v270 = vshrl.u32 %v269, 7
        %v271 = vsub.s32 2, %v270
        %v272 = vrot.slane %v259, %v271
        %v273 = vcombine.low %v264, %v268
        %v275 = vunpack.c.l.s4 1983009808
        %v276 = vunpack.c.0.s8 %v275
        %v277 = vlaneseq
        %v278 = vshrl.u32 %v277, 7
        %v279 = vsub.s32 %v276, %v278
        %v280 = vrot.slane %v273, %v279
        %v282 = vunpack.c.l.s4 1983009808
        %v283 = vunpack.c.0.s8 %v282
        %v284 = vlaneseq
        %v285 = vshrl.u32 %v284, 7
        %v286 = vsub.s32 %v283, %v285
        %v287 = vrot.slane %v272, %v286
        %v288 = vcombine.low %v280, %v287
        %v297 = vcombine.low %v245, %v246
        %v298 = vcombine.low %v247, %v248
        %v300 = vunpack.c.l.s4 1983009808
        %v301 = vunpack.c.0.s8 %v300
        %v302 = vlaneseq
        %v303 = vshrl.u32 %v302, 7
        %v304 = vsub.s32 %v301, %v303
        %v305 = vrot.slane %v297, %v304
        %v307 = vunpack.c.l.s4 1983009808
        %v308 = vunpack.c.0.s8 %v307
        %v309 = vlaneseq
        %v310 = vshrl.u32 %v309, 7
        %v311 = vsub.s32 %v308, %v310
        %v312 = vrot.slane %v298, %v311
        %v313 = vcombine.low %v305, %v312
        %v314 = vcombine.low %v249, %v250
        %v315 = vcombine.low %v251, %v252
        %v317 = vunpack.c.l.s4 1983009808
        %v318 = vunpack.c.0.s8 %v317
        %v319 = vlaneseq
        %v320 = vshrl.u32 %v319, 7
        %v321 = vsub.s32 %v318, %v320
        %v322 = vrot.slane %v314, %v321
        %v324 = vunpack.c.l.s4 1983009808
        %v325 = vunpack.c.0.s8 %v324
        %v326 = vlaneseq
        %v327 = vshrl.u32 %v326, 7
        %v328 = vsub.s32 %v325, %v327
        %v329 = vrot.slane %v315, %v328
        %v330 = vcombine.low %v322, %v329
        %v331 = vcombine.low %v288, %v288
        %v332 = vcombine.high %v288, %v288
        %v334 = vunpack.c.l.s4 1983009808
        %v335 = vunpack.c.0.s8 %v334
        %v336 = vlaneseq
        %v337 = vshrl.u32 %v336, 7
        %v338 = vsub.s32 %v335, %v337
        %v339 = vrot.slane %v331, %v338
        %v341 = vunpack.c.l.s4 1983009808
        %v342 = vunpack.c.0.s8 %v341
        %v343 = vlaneseq
        %v344 = vshrl.u32 %v343, 7
        %v345 = vsub.s32 %v342, %v344
        %v346 = vrot.slane %v332, %v345
        %v347 = vcombine.low %v339, %v339
        %v348 = vcombine.high %v339, %v339
        %v349 = vcombine.low %v346, %v346
        %vm353 = vcmask 130048
        %v354 = vsel %vm353, %v313, 0
        %v356 = vsel %vm353, %v330, 0
        %358 = vmatprep.subr.mxu0 %v254
        %359 = vmatpush1.msra.mxu0 %v253
        %360 = vmatprep.subr.mxu0 %v257
        %361 = vmatpush1.msra.mxu0 %v256
        %362 = vmatprep.subr.mxu0 0.0
        %363 = vmatpush1.msra.mxu0 0.0
        %364 = vmatprep.subr.mxu0 0.0
        %365 = vmatpush1.msra.mxu0 0.0
        %366 = vmatprep.subr.mxu0 0.0
        %367 = vmatpush1.msra.mxu0 0.0
        %368 = vmatprep.subr.mxu0 0.0
        %369 = vmatpush1.msra.mxu0 0.0
        %370 = vmatprep.subr.mxu0 0.0
        %371 = vmatpush1.msra.mxu0 0.0
        %372 = vmatprep.subr.mxu0 0.0
        %373 = vmatpush1.msra.mxu0 0.0
        %374 = vmatprep.subr.mxu0 0.0
        %375 = vmatpush1.msra.mxu0 0.0
        %376 = vmatprep.subr.mxu0 0.0
        %377 = vmatpush1.msra.mxu0 0.0
        %378 = vmatprep.subr.mxu0 0.0
        %379 = vmatpush1.msra.mxu0 0.0
        %380 = vmatprep.subr.mxu0 0.0
        %381 = vmatpush1.msra.mxu0 0.0
        %382 = vmatprep.subr.mxu0 0.0
        %383 = vmatpush1.msra.mxu0 0.0
        %384 = vmatprep.subr.mxu0 0.0
        %385 = vmatpush1.msra.mxu0 0.0
        %386 = vmatprep.subr.mxu0 0.0
        %387 = vmatpush1.msra.mxu0 0.0
        %388 = vmatprep.subr.mxu0 0.0
        %389 = vmatpush1.msra.mxu0 0.0
        %390 = vmatprep.subr.mxu0 0.0
        %391 = vmatpush1.msra.mxu0 0.0
        %392 = vmatprep.subr.mxu0 0.0
        %393 = vmatpush1.msra.mxu0 0.0
        %394 = vmatprep.subr.mxu0 0.0
        %395 = vmatpush1.msra.mxu0 0.0
        %396 = vmatprep.subr.mxu0 0.0
        %397 = vmatpush1.msra.mxu0 0.0
        %398 = vmatprep.subr.mxu0 0.0
        %399 = vmatpush1.msra.mxu0 0.0
        %400 = vmatprep.subr.mxu0 0.0
        %401 = vmatpush1.msra.mxu0 0.0
        %402 = vmatprep.subr.mxu0 0.0
        %403 = vmatpush1.msra.mxu0 0.0
        %404 = vmatprep.subr.mxu0 0.0
        %405 = vmatpush1.msra.mxu0 0.0
        %406 = vmatprep.subr.mxu0 0.0
        %407 = vmatpush1.msra.mxu0 0.0
        %408 = vmatprep.subr.mxu0 0.0
        %409 = vmatpush1.msra.mxu0 0.0
        %410 = vmatprep.subr.mxu0 0.0
        %411 = vmatpush1.msra.mxu0 0.0
        %412 = vmatprep.subr.mxu0 0.0
        %413 = vmatpush1.msra.mxu0 0.0
        %414 = vmatprep.subr.mxu0 0.0
        %415 = vmatpush1.msra.mxu0 0.0
        %416 = vmatprep.subr.mxu0 0.0
        %417 = vmatpush1.msra.mxu0 0.0
        %418 = vmatprep.subr.mxu0 0.0
        %419 = vmatpush1.msra.mxu0 0.0
        %420 = vmatprep.subr.mxu0 0.0
        %421 = vmatpush1.msra.mxu0 0.0
        %422 = vmatprep.mubr.f32.mxu0 0.0
        %423 = vmatmul.mubr.f32.gmra.mrb[0].mxu0 %v354
        %v424 = vpop.f32.mrb[0].mxu0
        %v425 = vadd.f32 %v347, %v424
        %v426 = vpop.f32.mrb[0].mxu0
        %v427 = vadd.f32 %v348, %v426
        %428 = vmatprep.mubr.f32.mxu0 0.0
        %429 = vmatmul.mubr.f32.gmra.mrb[0].mxu0 %v356
        %v430 = vpop.f32.mrb[0].mxu0
        %v431 = vadd.f32 %v347, %v430
        %v432 = vpop.f32.mrb[0].mxu0
        %v433 = vadd.f32 %v348, %v432
        %434 = vdwg.mxu0
        %435 = vmatprep.subr.mxu0 0.0
        %436 = vmatpush1.msra.mxu0 %v255
        %437 = vmatprep.subr.mxu0 0.0
        %438 = vmatpush1.msra.mxu0 %v258
        %439 = vmatprep.subr.mxu0 0.0
        %440 = vmatpush1.msra.mxu0 0.0
        %441 = vmatprep.subr.mxu0 0.0
        %442 = vmatpush1.msra.mxu0 0.0
        %443 = vmatprep.subr.mxu0 0.0
        %444 = vmatpush1.msra.mxu0 0.0
        %445 = vmatprep.subr.mxu0 0.0
        %446 = vmatpush1.msra.mxu0 0.0
        %447 = vmatprep.subr.mxu0 0.0
        %448 = vmatpush1.msra.mxu0 0.0
        %449 = vmatprep.subr.mxu0 0.0
        %450 = vmatpush1.msra.mxu0 0.0
        %451 = vmatprep.subr.mxu0 0.0
        %452 = vmatpush1.msra.mxu0 0.0
        %453 = vmatprep.subr.mxu0 0.0
        %454 = vmatpush1.msra.mxu0 0.0
        %455 = vmatprep.subr.mxu0 0.0
        %456 = vmatpush1.msra.mxu0 0.0
        %457 = vmatprep.subr.mxu0 0.0
        %458 = vmatpush1.msra.mxu0 0.0
        %459 = vmatprep.subr.mxu0 0.0
        %460 = vmatpush1.msra.mxu0 0.0
        %461 = vmatprep.subr.mxu0 0.0
        %462 = vmatpush1.msra.mxu0 0.0
        %463 = vmatprep.subr.mxu0 0.0
        %464 = vmatpush1.msra.mxu0 0.0
        %465 = vmatprep.subr.mxu0 0.0
        %466 = vmatpush1.msra.mxu0 0.0
        %467 = vmatprep.subr.mxu0 0.0
        %468 = vmatpush1.msra.mxu0 0.0
        %469 = vmatprep.subr.mxu0 0.0
        %470 = vmatpush1.msra.mxu0 0.0
        %471 = vmatprep.subr.mxu0 0.0
        %472 = vmatpush1.msra.mxu0 0.0
        %473 = vmatprep.subr.mxu0 0.0
        %474 = vmatpush1.msra.mxu0 0.0
        %475 = vmatprep.subr.mxu0 0.0
        %476 = vmatpush1.msra.mxu0 0.0
        %477 = vmatprep.subr.mxu0 0.0
        %478 = vmatpush1.msra.mxu0 0.0
        %479 = vmatprep.subr.mxu0 0.0
        %480 = vmatpush1.msra.mxu0 0.0
        %481 = vmatprep.subr.mxu0 0.0
        %482 = vmatpush1.msra.mxu0 0.0
        %483 = vmatprep.subr.mxu0 0.0
        %484 = vmatpush1.msra.mxu0 0.0
        %485 = vmatprep.subr.mxu0 0.0
        %486 = vmatpush1.msra.mxu0 0.0
        %487 = vmatprep.subr.mxu0 0.0
        %488 = vmatpush1.msra.mxu0 0.0
        %489 = vmatprep.subr.mxu0 0.0
        %490 = vmatpush1.msra.mxu0 0.0
        %491 = vmatprep.subr.mxu0 0.0
        %492 = vmatpush1.msra.mxu0 0.0
        %493 = vmatprep.subr.mxu0 0.0
        %494 = vmatpush1.msra.mxu0 0.0
        %495 = vmatprep.subr.mxu0 0.0
        %496 = vmatpush1.msra.mxu0 0.0
        %497 = vmatprep.subr.mxu0 0.0
        %498 = vmatpush1.msra.mxu0 0.0
        %499 = vmatprep.mubr.f32.mxu0 0.0
        %500 = vmatmul.mubr.f32.gmra.mrb[0].mxu0 %v354
        %v501 = vpop.f32.mrb[0].mxu0
        %v502 = vadd.f32 %v349, %v501
        %v503 = vpop.f32.mrb[0].mxu0
        %504 = vmatprep.mubr.f32.mxu0 0.0
        %505 = vmatmul.mubr.f32.gmra.mrb[0].mxu0 %v356
        %v506 = vpop.f32.mrb[0].mxu0
        %v507 = vadd.f32 %v349, %v506
        %v508 = vpop.f32.mrb[0].mxu0
        %509 = vdwg.mxu0
        %v516 = vcombine.low %v425, %v427
        %v517 = vcombine.high %v425, %v427
        %v518 = vcombine.high %v502, %v502
        %v520 = vunpack.c.l.s4 1983009808
        %v521 = vunpack.c.0.s8 %v520
        %v522 = vlaneseq
        %v523 = vshrl.u32 %v522, 7
        %v524 = vsub.s32 %v521, %v523
        %v525 = vrot.slane %v516, %v524
        %v527 = vunpack.c.l.s4 1983009808
        %v528 = vunpack.c.0.s8 %v527
        %v529 = vlaneseq
        %v530 = vshrl.u32 %v529, 7
        %v531 = vsub.s32 %v528, %v530
        %v532 = vrot.slane %v517, %v531
        %v534 = vunpack.c.l.s4 1983009808
        %v535 = vunpack.c.0.s8 %v534
        %v536 = vlaneseq
        %v537 = vshrl.u32 %v536, 7
        %v538 = vsub.s32 %v535, %v537
        %v539 = vrot.slane %v502, %v538
        %v541 = vunpack.c.l.s4 1983009808
        %v542 = vunpack.c.0.s8 %v541
        %v543 = vlaneseq
        %v544 = vshrl.u32 %v543, 7
        %v545 = vsub.s32 %v542, %v544
        %v546 = vrot.slane %v518, %v545
        %v547 = vcombine.low %v525, %v539
        %v548 = vcombine.high %v525, %v539
        %v549 = vcombine.low %v532, %v546
        %v550 = vcombine.high %v532, %v546
        %v551 = vcombine.low %v431, %v433
        %v552 = vcombine.high %v431, %v433
        %v553 = vcombine.high %v507, %v507
        %v555 = vunpack.c.l.s4 1983009808
        %v556 = vunpack.c.0.s8 %v555
        %v557 = vlaneseq
        %v558 = vshrl.u32 %v557, 7
        %v559 = vsub.s32 %v556, %v558
        %v560 = vrot.slane %v551, %v559
        %v562 = vunpack.c.l.s4 1983009808
        %v563 = vunpack.c.0.s8 %v562
        %v564 = vlaneseq
        %v565 = vshrl.u32 %v564, 7
        %v566 = vsub.s32 %v563, %v565
        %v567 = vrot.slane %v552, %v566
        %v569 = vunpack.c.l.s4 1983009808
        %v570 = vunpack.c.0.s8 %v569
        %v571 = vlaneseq
        %v572 = vshrl.u32 %v571, 7
        %v573 = vsub.s32 %v570, %v572
        %v574 = vrot.slane %v507, %v573
        %v576 = vunpack.c.l.s4 1983009808
        %v577 = vunpack.c.0.s8 %v576
        %v578 = vlaneseq
        %v579 = vshrl.u32 %v578, 7
        %v580 = vsub.s32 %v577, %v579
        %v581 = vrot.slane %v553, %v580
        %v582 = vcombine.low %v560, %v574
        %v583 = vcombine.high %v560, %v574
        %v584 = vcombine.low %v567, %v581
        %v585 = vcombine.high %v567, %v581
        %594 = vst [vmem:[%s238] sm:$0x3f] %v547
        %595 = vst [vmem:[%s238 + $0x6] sm:$0x3f] %v548
        %596 = vst [vmem:[%s238 + $0xc] sm:$0x3f] %v549
        %597 = vst [vmem:[%s238 + $0x12] sm:$0x3f] %v550
        %598 = vst [vmem:[%s238 + $0x18] sm:$0x3f] %v582
        %599 = vst [vmem:[%s238 + $0x1e] sm:$0x3f] %v583
        %600 = vst [vmem:[%s238 + $0x24] sm:$0x3f] %v584
        %601 = vst [vmem:[%s238 + $0x2a] sm:$0x3f] %v585
        %s602 = sand.u32 %s121, 1
        %s603 = scalar_lea.sflag [#allocation4], %s602
        %s604 = sand.u32 %s121, 1
        %s605 = smul.addr %s604, 48
        %s606 = scalar_lea.vmem [#allocation7], %s605
        // Predicated region
        $region41: #{tpu_custom_call.1} parent=31 // pred_check
          %p607 = pneg %p131
        $region42: #{tpu_custom_call.1} parent=31 // pred_check_branch
          %609 = sbr.rel (%p607) target = $region44
        $region43: #{tpu_custom_call.1} parent=31 // pred_region
          %s610 = smul.u32 8, %s26
          %s612 = ssub.s32 768, 768
          %613 = vsyncadd %s603, %s612
          %s614 = smul.addr %s610, 3
          %s615 = smul.addr %s25, 24
          %s616 = sadd.s32 %s614, %s615
          %s617 = smul.addr %s616, 32
          %s618 = scalar_lea.hbm %s3, %s617
          %s619 = sshll.u32 %s606, 4
          %s620 = int_to_ptr.vmem [resolvable:$true] %s619
          %625 = dma.vmem_to_hbm [thread:$0]  %s620, 768, %s618, %s603, 96, 96, 6
        $region44: #{tpu_custom_call.1} parent=31 // pred_fallthru
          _
      $region32: #{tpu_custom_call.1} parent=5 // pred_fallthru
        _
      %p626 = scmp.le.s32.totalorder 2, %s16
      // Predicated region
      $region45: #{tpu_custom_call.1} parent=5 // pred_check
        %p627 = pneg %p626
      $region46: #{tpu_custom_call.1} parent=5 // pred_check_branch
        %629 = sbr.rel (%p627) target = $region48
      $region47: #{tpu_custom_call.1} parent=5 // pred_region
        %s630 = ssub.s32 %s16, 2
        // Predicated region
        $region49: #{tpu_custom_call.1} parent=47 // pred_check
          %p631 = pneg %p137
        $region50: #{tpu_custom_call.1} parent=47 // pred_check_branch
          %633 = sbr.rel (%p631) target = $region52
        $region51: #{tpu_custom_call.1} parent=47 // pred_region
          %s634 = sand.u32 %s122, 1
          %s635 = scalar_lea.sflag [#allocation4], %s634
          %s636 = sand.u32 %s122, 1
          %s637 = smul.addr %s636, 48
          %s638 = scalar_lea.vmem [#allocation7], %s637
          %639 = dma.done %s635, 768
        $region52: #{tpu_custom_call.1} parent=47 // pred_fallthru
          _
      $region48: #{tpu_custom_call.1} parent=5 // pred_fallthru
        _
    $region6: #{tpu_custom_call.1} parent=1 // loop_footer
      %s20 = sadd.s32 1, %s16
    $region7: #{tpu_custom_call.1} parent=1 // loop_footer_branch
      %15 = sbr.rel target = $region3
    $region8: #{tpu_custom_call.1} parent=1 // loop_exit
      _
    %640 = vsyncpa [#allocation3], 1
    %s641 = scalar_lea.sflag [#allocation3], 1
    %642 = vsyncpa %s641, 1
    %643 = vsyncpa [#allocation6], 1
    %s644 = scalar_lea.sflag [#allocation6], 1
    %645 = vsyncpa %s644, 1
    %646 = vsyncpa [#allocation4], 1
    %s647 = scalar_lea.sflag [#allocation4], 1
    %648 = vsyncpa %s647, 1

</llo_original>
